<compile_context>
chip_gen: v7x
topology: tpu7x:2x2x1
jax: 0.10.0
libtpu: 0.0.40
codegen_flags: <defaults>
</compile_context>

<pallas_src>
import math
from functools import partial

import numpy as np
import jax
import jax.numpy as jnp
from jax.experimental import pallas as pl
from jax.experimental.pallas import tpu as pltpu


def _round_up(v, m):
    return ((v + m - 1) // m) * m


def _vmem_capacity_bytes():
    try:
        info = pltpu.get_tpu_info()
        cap = int(getattr(info, "vmem_capacity_bytes", 0) or 0)
        if cap > 0:
            return cap
    except Exception:
        pass
    return 64 << 20  # conservative fallback: v7x has the least physical VMEM


def _choose_tiles(batch_size, n_items):
    """Generation-aware tile sizing with honest per-step VMEM accounting."""
    cap = _vmem_capacity_bytes()
    # Working-set target: ~40 MiB on v7x (64 MiB physical), ~48 MiB on
    # v5e/v6e (128 MiB physical).
    target = min(cap * 5 // 8, 48 << 20)

    n_min = _round_up(max(int(n_items), 1), 128)
    tn = min(n_min, 4096)                      # item (contraction) tile
    n_pad = _round_up(n_min, tn)

    # Per-grid-step VMEM:
    #   mask : 2 (double-buffer) * TB * TN * 2 B   (bf16, no f32 widen)
    #   rhs  : 2 * TN * 128 * 2 B                  (bf16, double-buffered;
    #          constant when n_pad == tn -- could be single-buffered, but the
    #          budget already charges for both buffers so it is safe either way)
    #   acc  : TB * 128 * 4 B (f32 scratch) + ~TB*128*4 B epilogue temps
    #   out  : 2 * 8 * 128 * 4 B
    fixed = 2 * tn * 128 * 2 + 2 * 8 * 128 * 4
    per_row = 2 * tn * 2 + 2 * 128 * 4
    tb = (int(target * 0.8) - fixed) // per_row
    tb = max(16, (tb // 16) * 16)              # bf16 sublane packing
    tb = min(tb, 2048)                         # large tiles for v5e/v6e roofline
    tb = min(tb, _round_up(max(int(batch_size), 1), 16))

    working = fixed + tb * per_row
    vmem_limit = max(32 << 20, working + (8 << 20))
    vmem_limit = min(vmem_limit, cap - (8 << 20))
    vmem_limit = max(vmem_limit, working + (2 << 20))
    return int(tb), int(tn), int(n_pad), int(vmem_limit)


def build_assortment_mask(assortment_list, n_items):
    """Glue (not the hot path): ragged assortments -> dense bf16 {0,1} mask.

    Build once per dataset / batch layout and cache it; re-uploading a fresh
    dense mask every call would dominate runtime of this memory-bound kernel.
    """
    batch_size = len(assortment_list)
    block_rows, tn, n_pad, vmem_limit = _choose_tiles(batch_size, n_items)
    b_pad = _round_up(batch_size, block_rows)
    m = np.zeros((b_pad, n_pad), np.float32)
    for i, assortment in enumerate(assortment_list):
        m[i, np.asarray(assortment, np.int64)] = 1.0
    # bf16 is exact for {0,1}; halves the dominant HBM stream.
    # TODO(synk): on v7x an fp8 (E4M3) mask would halve it again -- gated on
    # Mosaic supporting that MXU operand-dtype combination.
    return jnp.asarray(m, jnp.bfloat16), dict(
        block_rows=block_rows, tn=tn, vmem_limit=vmem_limit,
        batch_size=batch_size)


def _mmnl_kernel(k_models):
    def kernel(mask_ref, rhs_ref, out_ref, acc_ref):
        kb = pl.program_id(1)

        @pl.when(kb == 0)
        def _():
            acc_ref[...] = jnp.zeros_like(acc_ref)

        # Single fused bf16 MXU matmul per tile (den lanes 0..K, num lanes
        # 64..64+K); f32 accumulation across item blocks in VMEM scratch.
        acc_ref[...] += jnp.dot(mask_ref[...], rhs_ref[...],
                                preferred_element_type=jnp.float32)

        @pl.when(kb == pl.num_programs(1) - 1)
        def _():
            s = acc_ref[...]                                   # (TB, 128) f32
            sum_ex = s[:, 0:1]                                 # sum_A exp(x)
            x_chosen = s[:, 64:65]                             # sum_A y*x
            den_z = s[:, 1:1 + k_models]                       # sum_A exp(z_k)
            num_z = s[:, 65:65 + k_models]                     # a_k*y*exp(z_k)

            den_safe = jnp.where(den_z > 0.0, den_z, 1.0)
            g = jnp.sum(num_z * pl.reciprocal(den_safe, approx=True),
                        axis=-1, keepdims=True)                # (TB, 1)

            valid = sum_ex > 0.0         # padded rows contribute exactly zero
            den = jnp.where(valid, sum_ex * g, 1.0)
            terms = jnp.where(
                valid,
                jnp.exp(x_chosen) * pl.reciprocal(den, approx=True),
                0.0)                                           # (TB, 1)
            partial = jnp.sum(terms, axis=0, keepdims=True)    # (1, 1)
            out_ref[...] = jnp.broadcast_to(partial, (8, 128))

    return kernel


@partial(jax.jit,
         static_argnames=("batch_size", "block_rows", "tn", "vmem_limit"))
def mmnl_loss_pallas(x, y, z, alpha, mask, *, batch_size, block_rows, tn,
                     vmem_limit):
    """x: (N,), y: (N,) 0/1 chosen indicator, z: (K, N), alpha: (K,),
    mask: (B_pad, N_pad) bf16 from build_assortment_mask."""
    b_pad, n_pad = mask.shape
    k_models = int(z.shape[0])
    assert 65 + k_models <= 128, "at most 63 mixture components supported"
    n_items = int(x.shape[0])

    xf = x.astype(jnp.float32)
    yf = y.astype(jnp.float32)
    zf = z.astype(jnp.float32)
    af = alpha.astype(jnp.float32)

    xp = jnp.zeros((n_pad,), jnp.float32).at[:n_items].set(xf)
    yp = jnp.zeros((n_pad,), jnp.float32).at[:n_items].set(yf)
    zp = jnp.zeros((k_models, n_pad), jnp.float32).at[:, :n_items].set(zf)

    ex = jnp.exp(xp)                          # (N_pad,)
    ez = jnp.exp(zp)                          # (K, N_pad)

    # Single fused lane-dense reduction matrix (bf16 on the MXU):
    #   lane 0         : exp(x)                 -> sum_A exp(x)
    #   lanes 1..K     : exp(z_k)               -> sum_A exp(z_k)
    #   lane 64        : y*x                    -> x[j*]
    #   lanes 65..64+K : alpha_k * y * exp(z_k) -> alpha_k * exp(z_k[j*])
    rhs = jnp.zeros((n_pad, 128), jnp.float32)
    rhs = rhs.at[:, 0].set(ex)
    rhs = rhs.at[:, 1:1 + k_models].set(ez.T)
    rhs = rhs.at[:, 64].set(yp * xp)
    rhs = rhs.at[:, 65:65 + k_models].set((af[:, None] * (yp[None, :] * ez)).T)
    rhs = rhs.astype(jnp.bfloat16)

    num_b_blocks = b_pad // block_rows
    num_k_blocks = n_pad // tn

    mask_bytes = int(b_pad) * int(n_pad) * 2
    rhs_bytes = int(n_pad) * 128 * 2 * num_b_blocks
    out_bytes = num_b_blocks * 8 * 128 * 4

    out = pl.pallas_call(
        _mmnl_kernel(k_models),
        out_shape=jax.ShapeDtypeStruct((num_b_blocks * 8, 128), jnp.float32),
        grid_spec=pltpu.PrefetchScalarGridSpec(
            num_scalar_prefetch=0,
            grid=(num_b_blocks, num_k_blocks),
            in_specs=[
                pl.BlockSpec((block_rows, tn), lambda i, kb: (i, kb)),  # mask
                pl.BlockSpec((tn, 128), lambda i, kb: (kb, 0)),         # rhs
            ],
            out_specs=pl.BlockSpec((8, 128), lambda i, kb: (i, 0)),
            scratch_shapes=[pltpu.VMEM((block_rows, 128), jnp.float32)],
        ),
        compiler_params=pltpu.CompilerParams(
            # batch axis parallel -> megacore sharding on v7x; item
            # (contraction) axis is a reduction -> arbitrary.
            dimension_semantics=("parallel", "arbitrary"),
            vmem_limit_bytes=vmem_limit,
        ),
        cost_estimate=pl.CostEstimate(
            flops=2 * int(b_pad) * int(n_pad) * 128,   # one fused matmul pass
            transcendentals=int(b_pad) * (k_models + 2),
            bytes_accessed=mask_bytes + rhs_bytes + out_bytes,
        ),
    )(mask, rhs)

    partials = out.reshape(num_b_blocks, 8, 128)[:, 0, 0]
    return -jnp.sum(partials) / jnp.float32(batch_size)


def mmnl_loss_reference(x, y, assortment_list, z, alpha):
    """Faithful float64 replica of the PyTorch loops."""
    x = np.asarray(x, np.float64)
    z = np.asarray(z, np.float64)
    alpha = np.asarray(alpha, np.float64)
    y = np.asarray(y)
    batch_size = len(assortment_list)
    model_num = alpha.shape[0]
    loss = 0.0
    for i in range(batch_size):
        g = 0.0
        temp_y = 0.0
        for k in range(model_num):
            temp_sum = 0.0
            for j in assortment_list[i]:
                temp_sum += math.exp(z[k, j])
                if y[j] == 1:
                    temp_y = math.exp(z[k, j])
            g = g + alpha[k] * temp_y / temp_sum
        idx = np.asarray(assortment_list[i], np.int64)
        numer = math.exp(float(np.sum(x[idx] * y[idx])))
        denom = float(np.sum(np.exp(x[idx]))) * g
        loss = loss + numer / denom
    return -loss / batch_size


if __name__ == "__main__":
    key = jax.random.PRNGKey(0)
    kx, kz, ka = jax.random.split(key, 3)

    # small deterministic problem: 24 items, 5 assortments, 5 mixture models
    n_items = 24
    k_models = 5
    assortment_list = [
        [0, 1, 2, 3],
        [4, 5, 6],
        [7, 8, 9, 10, 11],
        [12, 13, 14],
        [15, 16, 17, 18, 19],
    ]
    chosen = [1, 5, 9, 13, 17]

    x = jax.random.normal(kx, (n_items,), dtype=jnp.float32)
    z = jax.random.normal(kz, (k_models, n_items), dtype=jnp.float32)
    alpha = jax.nn.softmax(jax.random.normal(ka, (k_models,), dtype=jnp.float32))

    y_np = np.zeros((n_items,), np.float32)
    y_np[chosen] = 1.0
    y = jnp.asarray(y_np)

    mask, meta = build_assortment_mask(assortment_list, n_items)
    loss = mmnl_loss_pallas(
        x, y, z, alpha, mask,
        batch_size=meta["batch_size"], block_rows=meta["block_rows"],
        tn=meta["tn"], vmem_limit=meta["vmem_limit"])
    loss = jax.block_until_ready(loss)

    ref = mmnl_loss_reference(np.asarray(x), y_np, assortment_list,
                              np.asarray(z), np.asarray(alpha))
    # bf16 RHS rounding (~2^-9 rel) + EUP approx reciprocals -> ~1e-2 accuracy
    assert np.allclose(np.asarray(loss), ref, rtol=2e-2, atol=1e-6), (float(loss), ref)

    print("KERNEL_OK")
</pallas_src>

<mosaic_0001>
module attributes {stable_mosaic.version = 11 : i64} {
  func.func @kernel(%arg0: i32, %arg1: i32, %arg2: memref<16x128xbf16, #tpu.memory_space<vmem>>, %arg3: memref<128x128xbf16, #tpu.memory_space<vmem>>, %arg4: memref<8x128xf32, #tpu.memory_space<vmem>>, %arg5: memref<16x128xf32, #tpu.memory_space<vmem>>) attributes {dimension_semantics = [#tpu.dimension_semantics<parallel>, #tpu.dimension_semantics<arbitrary>], iteration_bounds = array<i64: 1, 1>, scalar_prefetch = 0 : i64, scratch_operands = 1 : i64, tpu.core_type = #tpu.core_type<tc>, window_params = [{transform_indices = @transform_0, window_bounds = array<i64: 16, 128>}, {transform_indices = @transform_1, window_bounds = array<i64: 128, 128>}, {transform_indices = @transform_2, window_bounds = array<i64: 8, 128>}]} {
    %c0_i32 = arith.constant 0 : i32
    %0 = arith.cmpi eq, %arg1, %c0_i32 : i32
    %1 = arith.extui %0 : i1 to i32
    %c0_i32_0 = arith.constant 0 : i32
    %2 = arith.cmpi ne, %1, %c0_i32_0 : i32
    scf.if %2 {
      %cst_10 = arith.constant 0.000000e+00 : f32
      %12 = vector.broadcast %cst_10 : f32 to vector<16x128xf32>
      %c0_11 = arith.constant 0 : index
      %c0_12 = arith.constant 0 : index
      %13 = vector.load %arg5[%c0_11, %c0_12] : memref<16x128xf32, #tpu.memory_space<vmem>>, vector<16x128xf32>
      tpu.vector_store %arg5[%c0_11, %c0_12], %12 {strides = array<i32>} : memref<16x128xf32, #tpu.memory_space<vmem>>, vector<16x128xf32>,
    } else {
    }
    %c0 = arith.constant 0 : index
    %c0_1 = arith.constant 0 : index
    %3 = vector.load %arg5[%c0, %c0_1] : memref<16x128xf32, #tpu.memory_space<vmem>>, vector<16x128xf32>
    %c0_2 = arith.constant 0 : index
    %c0_3 = arith.constant 0 : index
    %4 = vector.load %arg2[%c0_2, %c0_3] : memref<16x128xbf16, #tpu.memory_space<vmem>>, vector<16x128xbf16>
    %c0_4 = arith.constant 0 : index
    %c0_5 = arith.constant 0 : index
    %5 = vector.load %arg3[%c0_4, %c0_5] : memref<128x128xbf16, #tpu.memory_space<vmem>>, vector<128x128xbf16>
    %cst = arith.constant dense<0.000000e+00> : vector<16x128xf32>
    %6 = tpu.matmul %4, %5, %cst {dimension_numbers = #tpu.dot_dimension_numbers<[1], [0], [0], [1], [0, 0, 1, 1], [], []>} : vector<16x128xbf16>, vector<128x128xbf16>, vector<16x128xf32> -> vector<16x128xf32>
    %7 = arith.addf %3, %6 : vector<16x128xf32>
    %c0_6 = arith.constant 0 : index
    %c0_7 = arith.constant 0 : index
    %8 = vector.load %arg5[%c0_6, %c0_7] : memref<16x128xf32, #tpu.memory_space<vmem>>, vector<16x128xf32>
    tpu.vector_store %arg5[%c0_6, %c0_7], %7 {strides = array<i32>} : memref<16x128xf32, #tpu.memory_space<vmem>>, vector<16x128xf32>,
    %c0_i32_8 = arith.constant 0 : i32
    %9 = arith.cmpi eq, %arg1, %c0_i32_8 : i32
    %10 = arith.extui %9 : i1 to i32
    %c0_i32_9 = arith.constant 0 : i32
    %11 = arith.cmpi ne, %10, %c0_i32_9 : i32
    scf.if %11 {
      %c0_10 = arith.constant 0 : index
      %c0_11 = arith.constant 0 : index
      %12 = vector.load %arg5[%c0_10, %c0_11] : memref<16x128xf32, #tpu.memory_space<vmem>>, vector<16x128xf32>
      %13 = vector.extract_strided_slice %12 {offsets = [0, 0], sizes = [16, 1], strides = [1, 1]} : vector<16x128xf32> to vector<16x1xf32>
      %14 = vector.extract_strided_slice %12 {offsets = [0, 64], sizes = [16, 1], strides = [1, 1]} : vector<16x128xf32> to vector<16x1xf32>
      %15 = vector.extract_strided_slice %12 {offsets = [0, 1], sizes = [16, 5], strides = [1, 1]} : vector<16x128xf32> to vector<16x5xf32>
      %16 = vector.extract_strided_slice %12 {offsets = [0, 65], sizes = [16, 5], strides = [1, 1]} : vector<16x128xf32> to vector<16x5xf32>
      %cst_12 = arith.constant 0.000000e+00 : f32
      %17 = vector.broadcast %cst_12 : f32 to vector<16x5xf32>
      %18 = arith.cmpf ogt, %15, %17 : vector<16x5xf32>
      %cst_13 = arith.constant 1.000000e+00 : f32
      %19 = vector.broadcast %cst_13 : f32 to vector<16x5xf32>
      %20 = arith.select %18, %15, %19 : vector<16x5xi1>, vector<16x5xf32>
      %21 = tpu.reciprocal %20 {approx = true} : vector<16x5xf32> -> vector<16x5xf32>
      %22 = arith.mulf %16, %21 : vector<16x5xf32>
      %cst_14 = arith.constant dense<0.000000e+00> : vector<16xf32>
      %23 = vector.multi_reduction <add>, %22, %cst_14 [1] : vector<16x5xf32> to vector<16xf32>
      %24 = vector.shape_cast %23 : vector<16xf32> to vector<16x1xf32>
      %cst_15 = arith.constant 0.000000e+00 : f32
      %25 = vector.broadcast %cst_15 : f32 to vector<16x1xf32>
      %26 = arith.cmpf ogt, %13, %25 : vector<16x1xf32>
      %27 = arith.mulf %13, %24 : vector<16x1xf32>
      %cst_16 = arith.constant 1.000000e+00 : f32
      %28 = vector.broadcast %cst_16 : f32 to vector<16x1xf32>
      %29 = arith.select %26, %27, %28 : vector<16x1xi1>, vector<16x1xf32>
      %30 = math.exp %14 : vector<16x1xf32>
      %31 = tpu.reciprocal %29 {approx = true} : vector<16x1xf32> -> vector<16x1xf32>
      %32 = arith.mulf %30, %31 : vector<16x1xf32>
      %cst_17 = arith.constant 0.000000e+00 : f32
      %33 = vector.broadcast %cst_17 : f32 to vector<16x1xf32>
      %34 = arith.select %26, %32, %33 : vector<16x1xi1>, vector<16x1xf32>
      %cst_18 = arith.constant dense<0.000000e+00> : vector<1xf32>
      %35 = vector.multi_reduction <add>, %34, %cst_18 [0] : vector<16x1xf32> to vector<1xf32>
      %36 = vector.shape_cast %35 : vector<1xf32> to vector<1x1xf32>
      %37 = vector.shape_cast %36 : vector<1x1xf32> to vector<1x1xf32>
      %38 = vector.broadcast %37 : vector<1x1xf32> to vector<8x128xf32>
      %c0_19 = arith.constant 0 : index
      %c0_20 = arith.constant 0 : index
      %39 = vector.load %arg4[%c0_19, %c0_20] : memref<8x128xf32, #tpu.memory_space<vmem>>, vector<8x128xf32>
      tpu.vector_store %arg4[%c0_19, %c0_20], %38 {strides = array<i32>} : memref<8x128xf32, #tpu.memory_space<vmem>>, vector<8x128xf32>,
    } else {
    }
    return
  }
  func.func @transform_0(%arg0: i32, %arg1: i32) -> (i32, i32) {
    %c0_i32 = arith.constant 0 : i32
    return %arg0, %arg1 : i32, i32
  }
  func.func @transform_1(%arg0: i32, %arg1: i32) -> (i32, i32) {
    %c0_i32 = arith.constant 0 : i32
    %c0_i32_0 = arith.constant 0 : i32
    return %arg1, %c0_i32 : i32, i32
  }
  func.func @transform_2(%arg0: i32, %arg1: i32) -> (i32, i32) {
    %c0_i32 = arith.constant 0 : i32
    %c0_i32_0 = arith.constant 0 : i32
    return %arg0, %c0_i32 : i32, i32
  }
}

</mosaic_0001>

<llo_original>
// kernel: mmnl_loss_pallas.1
$region0: #{mmnl_loss_pallas.1}
  #allocation0 [shape = 'u32[]', space=smem, size = 0x4, offset = 0x4, fixed_abs, tag = 'smem constant byte address 0x4 - core index']
  #allocation1 [shape = 'u32[144,128]{1,0:T(1,128)}', space=vmem, size = 0x12000, scoped, tag = 'internal scratch']
  #allocation2 [shape = 'f32[16,128]{1,0:T(8,128)}', space=vmem, size = 0x2000, scoped, tag = 'scratch operand']
  %s0 = inlined_call_operand.vmem [shape: bf16[16,128], index: 0, kind: input, shape index: {}]
  %s1 = inlined_call_operand.vmem [shape: bf16[128,128], index: 1, kind: input, shape index: {}]
  %s2 = inlined_call_operand.vmem [shape: f32[8,128], index: 2, kind: output, shape index: {}]
  %s3 = sld [smem:[#allocation0]]
  $region26: #{mmnl_loss_pallas.1} parent=0
    _
  %s5 = ssub.s32 1, %s3
  %s6 = scalar_select 0, %s5, %s3
  // Predicated region
  $region2: #{mmnl_loss_pallas.1} parent=0 // pred_check
    _
  $region3: #{mmnl_loss_pallas.1} parent=0 // pred_check_branch
    %8 = sbr.rel (0) target = $region5
  $region4: #{mmnl_loss_pallas.1} parent=0 // pred_region
    _
  $region5: #{mmnl_loss_pallas.1} parent=0 // pred_fallthru
    _
  // Predicated region
  $region6: #{mmnl_loss_pallas.1} parent=0 // pred_check
    _
  $region7: #{mmnl_loss_pallas.1} parent=0 // pred_check_branch
    %10 = sbr.rel (0) target = $region9
  $region8: #{mmnl_loss_pallas.1} parent=0 // pred_region
    _
  $region9: #{mmnl_loss_pallas.1} parent=0 // pred_fallthru
    _
  %p12 = scmp.eq.s32.totalorder 0, 0
  // Predicated region
  $region10: #{mmnl_loss_pallas.1} parent=0 // pred_check
    %p13 = pneg %p12
  $region11: #{mmnl_loss_pallas.1} parent=0 // pred_check_branch
    %15 = sbr.rel (%p13) target = $region13
  $region12: #{mmnl_loss_pallas.1} parent=0 // pred_region
    %16 = vst [vmem:[#allocation2] sm:$0xff] 0.0
    %17 = vst [vmem:[#allocation2 + $0x8] sm:$0xff] 0.0
  $region13: #{mmnl_loss_pallas.1} parent=0 // pred_fallthru
    _
  %v18 = vld [vmem:[#allocation2] sm:$0xff]
  %v19 = vld [vmem:[#allocation2 + $0x8] sm:$0xff]
  %v20 = vld [vmem:[%s0] sm:$0xf]
  %v21 = vld [vmem:[%s0 + $0x4] sm:$0xf]
  %v22 = vld [vmem:[%s1] sm:$0xf]
  %v23 = vld [vmem:[%s1 + $0x4] sm:$0xf]
  %v24 = vld [vmem:[%s1 + $0x8] sm:$0xf]
  %v25 = vld [vmem:[%s1 + $0xc] sm:$0xf]
  %v26 = vld [vmem:[%s1 + $0x10] sm:$0xf]
  %v27 = vld [vmem:[%s1 + $0x14] sm:$0xf]
  %v28 = vld [vmem:[%s1 + $0x18] sm:$0xf]
  %v29 = vld [vmem:[%s1 + $0x1c] sm:$0xf]
  %v30 = vld [vmem:[%s1 + $0x20] sm:$0xf]
  %v31 = vld [vmem:[%s1 + $0x24] sm:$0xf]
  %v32 = vld [vmem:[%s1 + $0x28] sm:$0xf]
  %v33 = vld [vmem:[%s1 + $0x2c] sm:$0xf]
  %v34 = vld [vmem:[%s1 + $0x30] sm:$0xf]
  %v35 = vld [vmem:[%s1 + $0x34] sm:$0xf]
  %v36 = vld [vmem:[%s1 + $0x38] sm:$0xf]
  %v37 = vld [vmem:[%s1 + $0x3c] sm:$0xf]
  %v40 = vunpack.c.l.b16 %v20
  %v41 = vunpack.c.l.b16 %v21
  %v42 = vpack.c.b16 %v41, %v40
  %v60 = vunpack.c.l.b16 %v22
  %v61 = vunpack.c.l.b16 %v23
  %v62 = vunpack.c.l.b16 %v24
  %v63 = vunpack.c.l.b16 %v25
  %v64 = vunpack.c.l.b16 %v26
  %v65 = vunpack.c.l.b16 %v27
  %v66 = vunpack.c.l.b16 %v28
  %v67 = vunpack.c.l.b16 %v29
  %v68 = vunpack.c.l.b16 %v30
  %v69 = vunpack.c.l.b16 %v31
  %v70 = vunpack.c.l.b16 %v32
  %v71 = vunpack.c.l.b16 %v33
  %v72 = vunpack.c.l.b16 %v34
  %v73 = vunpack.c.l.b16 %v35
  %v74 = vunpack.c.l.b16 %v36
  %v75 = vunpack.c.l.b16 %v37
  %v76 = vpack.c.b16 %v61, %v60
  %v77 = vpack.c.b16 %v63, %v62
  %v78 = vpack.c.b16 %v65, %v64
  %v79 = vpack.c.b16 %v67, %v66
  %v80 = vpack.c.b16 %v69, %v68
  %v81 = vpack.c.b16 %v71, %v70
  %v82 = vpack.c.b16 %v73, %v72
  %v83 = vpack.c.b16 %v75, %v74
  %92 = vmatprep.subr.bf16.mxu0 0
  %93 = vmatpush1.bf16.msra.mxu0 %v76
  %94 = vmatprep.subr.bf16.mxu0 0
  %95 = vmatpush1.bf16.msra.mxu0 %v77
  %96 = vmatprep.subr.bf16.mxu0 0
  %97 = vmatpush1.bf16.msra.mxu0 %v78
  %98 = vmatprep.subr.bf16.mxu0 0
  %99 = vmatpush1.bf16.msra.mxu0 %v79
  %100 = vmatprep.subr.bf16.mxu0 0
  %101 = vmatpush1.bf16.msra.mxu0 %v80
  %102 = vmatprep.subr.bf16.mxu0 0
  %103 = vmatpush1.bf16.msra.mxu0 %v81
  %104 = vmatprep.subr.bf16.mxu0 0
  %105 = vmatpush1.bf16.msra.mxu0 %v82
  %106 = vmatprep.subr.bf16.mxu0 0
  %107 = vmatpush1.bf16.msra.mxu0 %v83
  %108 = vmatprep.subr.bf16.mxu0 0
  %109 = vmatpush1.bf16.msra.mxu0 0
  %110 = vmatprep.subr.bf16.mxu0 0
  %111 = vmatpush1.bf16.msra.mxu0 0
  %112 = vmatprep.subr.bf16.mxu0 0
  %113 = vmatpush1.bf16.msra.mxu0 0
  %114 = vmatprep.subr.bf16.mxu0 0
  %115 = vmatpush1.bf16.msra.mxu0 0
  %116 = vmatprep.subr.bf16.mxu0 0
  %117 = vmatpush1.bf16.msra.mxu0 0
  %118 = vmatprep.subr.bf16.mxu0 0
  %119 = vmatpush1.bf16.msra.mxu0 0
  %120 = vmatprep.subr.bf16.mxu0 0
  %121 = vmatpush1.bf16.msra.mxu0 0
  %122 = vmatprep.subr.bf16.mxu0 0
  %123 = vmatpush1.bf16.msra.mxu0 0
  %124 = vmatprep.mubr.bf16.mxu0 0
  %125 = vmatmul.mubr.bf16.gmra.mrb[0].mxu0 %v42
  %v126 = vpop.f32.mrb[0].mxu0
  %v127 = vadd.f32 0.0, %v126
  %v128 = vpop.f32.mrb[0].mxu0
  %v129 = vpop.f32.mrb[0].mxu0
  %v130 = vadd.f32 0.0, %v129
  %v131 = vpop.f32.mrb[0].mxu0
  %132 = vdwg.mxu0
  %v133 = vadd.f32 %v18, %v127
  %v134 = vadd.f32 %v19, %v130
  %135 = vst [vmem:[#allocation2] sm:$0xff] %v133
  %136 = vst [vmem:[#allocation2 + $0x8] sm:$0xff] %v134
  // Predicated region
  $region14: #{mmnl_loss_pallas.1} parent=0 // pred_check
    %p137 = pneg %p12
  $region15: #{mmnl_loss_pallas.1} parent=0 // pred_check_branch
    %139 = sbr.rel (%p137) target = $region17
  $region16: #{mmnl_loss_pallas.1} parent=0 // pred_region
    %v140 = vld [vmem:[#allocation2] sm:$0xff]
    %v141 = vld [vmem:[#allocation2 + $0x8] sm:$0xff]
    %vm142 = vcmp.gt.f32.partialorder %v140, 0.0
    %vm143 = vcmp.gt.f32.partialorder %v141, 0.0
    %v144 = vsel %vm142, %v140, 1.0
    %v145 = vsel %vm143, %v141, 1.0
    %v146 = vrcp.pop %v144
    %v147 = vrcp.pop %v145
    %150 = vrot.lane.b32.xlu0 %v146, 64
    %v151 = vpop.permute.xlu0 %150
    %152 = vrot.lane.b32.xlu0 %v147, 64
    %v153 = vpop.permute.xlu0 %152
    %v156 = vmul.f32 %v140, %v151
    %v157 = vmul.f32 %v141, %v153
    %160 = vrot.lane.b32.xlu0 %v156, 63
    %v161 = vpop.permute.xlu0 %160
    %162 = vrot.lane.b32.xlu0 %v157, 63
    %v163 = vpop.permute.xlu0 %162
    %vm166 = vcmask 39936
    %v167 = vsel %vm166, %v161, 0.0
    %168 = vadd.xlane.f32.xlu0 %v167
    %v169 = vpop.xlane.xlu0 %168
    %v170 = vsel %vm166, %v163, 0.0
    %171 = vadd.xlane.f32.xlu0 %v170
    %v172 = vpop.xlane.xlu0 %171
    %v173 = vmul.f32 %v140, %v169
    %v174 = vmul.f32 %v141, %v172
    %v175 = vsel %vm142, %v173, 1.0
    %v176 = vsel %vm143, %v174, 1.0
    %v177 = vmul.f32 %v140, 1.442695
    %v178 = vpow.pop %v177
    %v179 = vmul.f32 %v141, 1.442695
    %v180 = vpow.pop %v179
    %v181 = vrcp.pop %v175
    %v182 = vrcp.pop %v176
    %185 = vrot.lane.b32.xlu0 %v181, 64
    %v186 = vpop.permute.xlu0 %185
    %187 = vrot.lane.b32.xlu0 %v182, 64
    %v188 = vpop.permute.xlu0 %187
    %v191 = vmul.f32 %v178, %v186
    %v192 = vmul.f32 %v180, %v188
    %195 = vrot.lane.b32.xlu0 %v191, 64
    %v196 = vpop.permute.xlu0 %195
    %197 = vrot.lane.b32.xlu0 %v192, 64
    %v198 = vpop.permute.xlu0 %197
    %v201 = vsel %vm142, %v196, 0.0
    %v202 = vsel %vm143, %v198, 0.0
    %vm203 = vcmask 7168
    %v204 = vsel %vm203, %v201, 0.0
    %v205 = vsel %vm203, %v202, 0.0
    %v206 = vadd.f32 %v204, %v205
    %v207 = vrot.slane %v206, 4
    %v208 = vadd.f32 %v206, %v207
    %v209 = vrot.slane %v208, 2
    %v210 = vadd.f32 %v208, %v209
    %v211 = vrot.slane %v210, 1
    %v212 = vadd.f32 %v210, %v211
    %214 = vset.pattern.permute.xlu0 0
    %215 = vperm.xlu0 %214, %v212
    %v216 = vpop.permute.xlu0 %215
    %218 = vst [vmem:[%s2] sm:$0xff] %v216
  $region17: #{mmnl_loss_pallas.1} parent=0 // pred_fallthru
    _
  // Predicated region
  $region18: #{mmnl_loss_pallas.1} parent=0 // pred_check
    _
  $region19: #{mmnl_loss_pallas.1} parent=0 // pred_check_branch
    %220 = sbr.rel (0) target = $region21
  $region20: #{mmnl_loss_pallas.1} parent=0 // pred_region
    _
  $region21: #{mmnl_loss_pallas.1} parent=0 // pred_fallthru
    _
  // Predicated region
  $region22: #{mmnl_loss_pallas.1} parent=0 // pred_check
    _
  $region23: #{mmnl_loss_pallas.1} parent=0 // pred_check_branch
    %222 = sbr.rel (0) target = $region25
  $region24: #{mmnl_loss_pallas.1} parent=0 // pred_region
    _
  $region25: #{mmnl_loss_pallas.1} parent=0 // pred_fallthru
    _

</llo_original>
